<compile_context>
chip_gen: v5e
topology: v5e:2x2
jax: 0.10.0
libtpu: 0.0.40
codegen_flags: <defaults>
</compile_context>

<pallas_src>
import jax
import jax.numpy as jnp
from jax.experimental import pallas as pl
from jax.experimental.pallas import tpu as pltpu

EPS = 1e-6

# Conservative VMEM budget for tile selection: fits v5e's 16 MiB scoped
# default and leaves headroom on v7x's 32 MiB scoped / 64 MiB physical.
_VMEM_BUDGET_BYTES = 12 * 1024 * 1024


def _round_up(a: int, m: int) -> int:
    return (a + m - 1) // m * m


def _cahe_kernel(x_ref, tbl_ref, o_ref, acc_ref):
    # x_ref  : (TB, L)  int32  history indices for this batch tile (0 = padding)
    # tbl_ref: (TV, Dp) f32/bf16 vocab tile of the (column-padded) embedding table
    # o_ref  : (TB, Dp) f32    pooled output for this batch tile
    # acc_ref: (TB, Dp) f32    VMEM accumulator, persists across vocab tiles
    v_idx = pl.program_id(1)

    @pl.when(v_idx == 0)
    def _():
        acc_ref[...] = jnp.zeros_like(acc_ref)

    x = x_ref[...]                                        # (TB, L) int32
    tb, L = x.shape
    tv = tbl_ref.shape[0]
    v_base = v_idx * tv

    # Histogram of this vocab tile: hist[b, j] = #{ l : x[b, l] == v_base + j }.
    # Static unrolled loop over L: pure VPU compares/adds on (TB, TV) vregs,
    # int32 accumulation, single cast before the matmul.
    row_ids = jax.lax.broadcasted_iota(jnp.int32, (1, tv), 1) + v_base   # (1, TV)
    hist = jnp.zeros((tb, tv), jnp.int32)
    for l in range(L):                                    # static (trace-time) unroll
        hist = hist + (x[:, l:l + 1] == row_ids).astype(jnp.int32)

    # Sum of embeddings for this vocab tile — MXU matmul, f32 accumulation.
    acc_ref[...] += jnp.dot(hist.astype(tbl_ref.dtype), tbl_ref[...],
                            preferred_element_type=jnp.float32)

    @pl.when(v_idx == pl.num_programs(1) - 1)
    def _():
        count = jnp.sum((x > 0).astype(jnp.float32), axis=1, keepdims=True)  # (TB, 1)
        o_ref[...] = (acc_ref[...] / (count + EPS)).astype(o_ref.dtype)


def categorical_article_history_embedding(x, table, *, tb=None, tv=None,
                                          use_bf16_table=False):
    """x: (B, L) int indices; table: (V, D) float embedding weights (row 0 = pad).

    Returns (B, 1, D) float32, matching the PyTorch module's forward.
    """
    B, L = x.shape
    V, D = table.shape

    x = x.astype(jnp.int32)
    tbl_dtype = jnp.bfloat16 if use_bf16_table else jnp.float32
    table = table.astype(tbl_dtype)
    tbl_itemsize = jnp.dtype(tbl_dtype).itemsize

    # --- tile / padding selection -------------------------------------------
    # Lane-dense output & accumulator: pad D to a multiple of 128.
    Dp = _round_up(max(D, 128), 128)

    # Batch tile: multiple of 8; guarantee >= 2 'parallel' steps when B > 8 so
    # v7x megacore can shard the histogram work across its two TensorCores.
    if tb is None:
        tb = min(128, _round_up(B, 8))
        if _round_up(B, tb) // tb < 2 and B > 8:
            tb = _round_up(pl.cdiv(B, 2), 8)
    tb = max(8, _round_up(tb, 8))
    Bp = _round_up(B, tb)

    # Vocab tile: multiple of 128 (MXU contraction width).  If the whole padded
    # table (double-buffered) plus per-tile intermediates fits the conservative
    # VMEM budget, keep it fully resident (vocab grid axis == 1, table read
    # from HBM exactly once).
    Vp0 = _round_up(max(V, 128), 128)
    if tv is None:
        resident_cost = (2 * Vp0 * Dp * tbl_itemsize      # double-buffered table tile
                         + 3 * tb * Vp0 * 4               # hist int32/f32 + compare temps
                         + 3 * tb * Dp * 4                # acc + double-buffered out
                         + 2 * tb * L * 4)                # x tile
        tv = Vp0 if resident_cost <= _VMEM_BUDGET_BYTES else 512
    tv = min(_round_up(tv, 128), Vp0)
    Vp = _round_up(V, tv)

    # --- padding --------------------------------------------------------------
    if Bp != B:
        x = jnp.pad(x, ((0, Bp - B), (0, 0)))             # padded rows: all index 0
    if Vp != V or Dp != D:
        table = jnp.pad(table, ((0, Vp - V), (0, Dp - D)))  # zero rows/cols, never matched

    grid = (Bp // tb, Vp // tv)

    out = pl.pallas_call(
        _cahe_kernel,
        out_shape=jax.ShapeDtypeStruct((Bp, Dp), jnp.float32),
        grid_spec=pltpu.PrefetchScalarGridSpec(
            num_scalar_prefetch=0,
            grid=grid,
            in_specs=[
                # index tile: resident across the whole vocab reduction
                pl.BlockSpec((tb, L), lambda b, v: (b, 0)),
                # table tile: streamed along the reduction axis (or resident if tv == Vp)
                pl.BlockSpec((tv, Dp), lambda b, v: (v, 0)),
            ],
            out_specs=pl.BlockSpec((tb, Dp), lambda b, v: (b, 0)),
            scratch_shapes=[pltpu.VMEM((tb, Dp), jnp.float32)],
        ),
        compiler_params=pltpu.CompilerParams(
            dimension_semantics=("parallel", "arbitrary"),
        ),
    )(x, table)

    # (Bp, Dp) -> (B, 1, D)  (matches h.unsqueeze(1)).
    return out[:B, :D][:, None, :]


def _reference(x, table):
    """Pure-JAX reference mirroring the PyTorch forward."""
    h = jnp.take(table.astype(jnp.float32), x, axis=0)     # (B, L, D)
    summed = jnp.sum(h, axis=-2)                           # (B, D)
    count = jnp.sum(x > 0, axis=-1, keepdims=True).astype(jnp.float32)
    return (summed / (count + EPS))[:, None, :]


if __name__ == "__main__":
    key = jax.random.PRNGKey(0)
    k_idx, k_tbl, k_pad, k_idx2, k_tbl2 = jax.random.split(key, 5)

    # ---- case 1: defaults (resident table, 2 batch tiles) --------------------
    B, L = 12, 8          # batch, history length
    V, D = 100, 32        # num_embeddings, embedding_dim

    x = jax.random.randint(k_idx, (B, L), 0, V, dtype=jnp.int32)
    pad_mask = jax.random.uniform(k_pad, (B, L)) < 0.3
    x = jnp.where(pad_mask, 0, x)

    table = jax.random.normal(k_tbl, (V, D), dtype=jnp.float32)
    table = table.at[0].set(0.0)          # padding_idx=0 row, as nn.Embedding init does

    out = categorical_article_history_embedding(x, table)
    out = jax.block_until_ready(out)
    ref = _reference(x, table)
    assert out.shape == (B, 1, D)
    assert not bool(jnp.any(jnp.isnan(out)))
    assert bool(jnp.allclose(out, ref, atol=1e-5, rtol=1e-5))

    # ---- case 2: forced multi-step vocab reduction (grid = (2, 3)) -----------
    V2 = 300
    x2 = jax.random.randint(k_idx2, (B, L), 0, V2, dtype=jnp.int32)
    x2 = jnp.where(pad_mask, 0, x2)
    table2 = jax.random.normal(k_tbl2, (V2, D), dtype=jnp.float32)
    table2 = table2.at[0].set(0.0)

    out2 = categorical_article_history_embedding(x2, table2, tb=8, tv=128)
    out2 = jax.block_until_ready(out2)
    ref2 = _reference(x2, table2)
    assert out2.shape == (B, 1, D)
    assert bool(jnp.allclose(out2, ref2, atol=1e-5, rtol=1e-5))

    print("KERNEL_OK")
</pallas_src>

<mosaic_0001>
module attributes {stable_mosaic.version = 11 : i64} {
  func.func @_cahe_kernel(%arg0: i32, %arg1: i32, %arg2: memref<8x8xi32, #tpu.memory_space<vmem>>, %arg3: memref<128x128xf32, #tpu.memory_space<vmem>>, %arg4: memref<8x128xf32, #tpu.memory_space<vmem>>, %arg5: memref<8x128xf32, #tpu.memory_space<vmem>>) attributes {dimension_semantics = [#tpu.dimension_semantics<parallel>, #tpu.dimension_semantics<arbitrary>], iteration_bounds = array<i64: 2, 1>, scalar_prefetch = 0 : i64, scratch_operands = 1 : i64, tpu.core_type = #tpu.core_type<tc>, window_params = [{transform_indices = @transform_0, window_bounds = array<i64: 8, 8>}, {transform_indices = @transform_1, window_bounds = array<i64: 128, 128>}, {transform_indices = @transform_2, window_bounds = array<i64: 8, 128>}]} {
    %c0_i32 = arith.constant 0 : i32
    %0 = arith.cmpi eq, %arg1, %c0_i32 : i32
    %1 = arith.extui %0 : i1 to i32
    %c0_i32_0 = arith.constant 0 : i32
    %2 = arith.cmpi ne, %1, %c0_i32_0 : i32
    scf.if %2 {
      %cst_11 = arith.constant 0.000000e+00 : f32
      %66 = vector.broadcast %cst_11 : f32 to vector<8x128xf32>
      %c0_12 = arith.constant 0 : index
      %c0_13 = arith.constant 0 : index
      %67 = vector.load %arg5[%c0_12, %c0_13] : memref<8x128xf32, #tpu.memory_space<vmem>>, vector<8x128xf32>
      tpu.vector_store %arg5[%c0_12, %c0_13], %66 {strides = array<i32>} : memref<8x128xf32, #tpu.memory_space<vmem>>, vector<8x128xf32>,
    } else {
    }
    %c0 = arith.constant 0 : index
    %c0_1 = arith.constant 0 : index
    %3 = vector.load %arg2[%c0, %c0_1] : memref<8x8xi32, #tpu.memory_space<vmem>>, vector<8x8xi32>
    %c128_i32 = arith.constant 128 : i32
    %4 = arith.muli %arg1, %c128_i32 : i32
    %5 = tpu.iota {dimensions = array<i32: 1>} : vector<1x128xi32>
    %6 = vector.broadcast %4 : i32 to vector<1x128xi32>
    %7 = arith.addi %5, %6 : vector<1x128xi32>
    %c0_i32_2 = arith.constant 0 : i32
    %8 = vector.broadcast %c0_i32_2 : i32 to vector<8x128xi32>
    %9 = vector.extract_strided_slice %3 {offsets = [0, 0], sizes = [8, 1], strides = [1, 1]} : vector<8x8xi32> to vector<8x1xi32>
    %10 = vector.broadcast %9 : vector<8x1xi32> to vector<8x128xi32>
    %11 = vector.broadcast %7 : vector<1x128xi32> to vector<8x128xi32>
    %12 = arith.cmpi eq, %10, %11 : vector<8x128xi32>
    %13 = arith.extui %12 : vector<8x128xi1> to vector<8x128xi32>
    %14 = arith.addi %8, %13 : vector<8x128xi32>
    %15 = vector.extract_strided_slice %3 {offsets = [0, 1], sizes = [8, 1], strides = [1, 1]} : vector<8x8xi32> to vector<8x1xi32>
    %16 = vector.broadcast %15 : vector<8x1xi32> to vector<8x128xi32>
    %17 = vector.broadcast %7 : vector<1x128xi32> to vector<8x128xi32>
    %18 = arith.cmpi eq, %16, %17 : vector<8x128xi32>
    %19 = arith.extui %18 : vector<8x128xi1> to vector<8x128xi32>
    %20 = arith.addi %14, %19 : vector<8x128xi32>
    %21 = vector.extract_strided_slice %3 {offsets = [0, 2], sizes = [8, 1], strides = [1, 1]} : vector<8x8xi32> to vector<8x1xi32>
    %22 = vector.broadcast %21 : vector<8x1xi32> to vector<8x128xi32>
    %23 = vector.broadcast %7 : vector<1x128xi32> to vector<8x128xi32>
    %24 = arith.cmpi eq, %22, %23 : vector<8x128xi32>
    %25 = arith.extui %24 : vector<8x128xi1> to vector<8x128xi32>
    %26 = arith.addi %20, %25 : vector<8x128xi32>
    %27 = vector.extract_strided_slice %3 {offsets = [0, 3], sizes = [8, 1], strides = [1, 1]} : vector<8x8xi32> to vector<8x1xi32>
    %28 = vector.broadcast %27 : vector<8x1xi32> to vector<8x128xi32>
    %29 = vector.broadcast %7 : vector<1x128xi32> to vector<8x128xi32>
    %30 = arith.cmpi eq, %28, %29 : vector<8x128xi32>
    %31 = arith.extui %30 : vector<8x128xi1> to vector<8x128xi32>
    %32 = arith.addi %26, %31 : vector<8x128xi32>
    %33 = vector.extract_strided_slice %3 {offsets = [0, 4], sizes = [8, 1], strides = [1, 1]} : vector<8x8xi32> to vector<8x1xi32>
    %34 = vector.broadcast %33 : vector<8x1xi32> to vector<8x128xi32>
    %35 = vector.broadcast %7 : vector<1x128xi32> to vector<8x128xi32>
    %36 = arith.cmpi eq, %34, %35 : vector<8x128xi32>
    %37 = arith.extui %36 : vector<8x128xi1> to vector<8x128xi32>
    %38 = arith.addi %32, %37 : vector<8x128xi32>
    %39 = vector.extract_strided_slice %3 {offsets = [0, 5], sizes = [8, 1], strides = [1, 1]} : vector<8x8xi32> to vector<8x1xi32>
    %40 = vector.broadcast %39 : vector<8x1xi32> to vector<8x128xi32>
    %41 = vector.broadcast %7 : vector<1x128xi32> to vector<8x128xi32>
    %42 = arith.cmpi eq, %40, %41 : vector<8x128xi32>
    %43 = arith.extui %42 : vector<8x128xi1> to vector<8x128xi32>
    %44 = arith.addi %38, %43 : vector<8x128xi32>
    %45 = vector.extract_strided_slice %3 {offsets = [0, 6], sizes = [8, 1], strides = [1, 1]} : vector<8x8xi32> to vector<8x1xi32>
    %46 = vector.broadcast %45 : vector<8x1xi32> to vector<8x128xi32>
    %47 = vector.broadcast %7 : vector<1x128xi32> to vector<8x128xi32>
    %48 = arith.cmpi eq, %46, %47 : vector<8x128xi32>
    %49 = arith.extui %48 : vector<8x128xi1> to vector<8x128xi32>
    %50 = arith.addi %44, %49 : vector<8x128xi32>
    %51 = vector.extract_strided_slice %3 {offsets = [0, 7], sizes = [8, 1], strides = [1, 1]} : vector<8x8xi32> to vector<8x1xi32>
    %52 = vector.broadcast %51 : vector<8x1xi32> to vector<8x128xi32>
    %53 = vector.broadcast %7 : vector<1x128xi32> to vector<8x128xi32>
    %54 = arith.cmpi eq, %52, %53 : vector<8x128xi32>
    %55 = arith.extui %54 : vector<8x128xi1> to vector<8x128xi32>
    %56 = arith.addi %50, %55 : vector<8x128xi32>
    %c0_3 = arith.constant 0 : index
    %c0_4 = arith.constant 0 : index
    %57 = vector.load %arg5[%c0_3, %c0_4] : memref<8x128xf32, #tpu.memory_space<vmem>>, vector<8x128xf32>
    %58 = arith.sitofp %56 : vector<8x128xi32> to vector<8x128xf32>
    %c0_5 = arith.constant 0 : index
    %c0_6 = arith.constant 0 : index
    %59 = vector.load %arg3[%c0_5, %c0_6] : memref<128x128xf32, #tpu.memory_space<vmem>>, vector<128x128xf32>
    %cst = arith.constant dense<0.000000e+00> : vector<8x128xf32>
    %60 = tpu.matmul %58, %59, %cst {dimension_numbers = #tpu.dot_dimension_numbers<[1], [0], [0], [1], [0, 0, 1, 1], [], []>} : vector<8x128xf32>, vector<128x128xf32>, vector<8x128xf32> -> vector<8x128xf32>
    %61 = arith.addf %57, %60 : vector<8x128xf32>
    %c0_7 = arith.constant 0 : index
    %c0_8 = arith.constant 0 : index
    %62 = vector.load %arg5[%c0_7, %c0_8] : memref<8x128xf32, #tpu.memory_space<vmem>>, vector<8x128xf32>
    tpu.vector_store %arg5[%c0_7, %c0_8], %61 {strides = array<i32>} : memref<8x128xf32, #tpu.memory_space<vmem>>, vector<8x128xf32>,
    %c0_i32_9 = arith.constant 0 : i32
    %63 = arith.cmpi eq, %arg1, %c0_i32_9 : i32
    %64 = arith.extui %63 : i1 to i32
    %c0_i32_10 = arith.constant 0 : i32
    %65 = arith.cmpi ne, %64, %c0_i32_10 : i32
    scf.if %65 {
      %c0_i32_11 = arith.constant 0 : i32
      %66 = vector.broadcast %c0_i32_11 : i32 to vector<8x8xi32>
      %67 = arith.cmpi sgt, %3, %66 : vector<8x8xi32>
      %68 = arith.extui %67 : vector<8x8xi1> to vector<8x8xi32>
      %69 = arith.sitofp %68 : vector<8x8xi32> to vector<8x8xf32>
      %cst_12 = arith.constant dense<0.000000e+00> : vector<8xf32>
      %70 = vector.multi_reduction <add>, %69, %cst_12 [1] : vector<8x8xf32> to vector<8xf32>
      %71 = vector.shape_cast %70 : vector<8xf32> to vector<8x1xf32>
      %c0_13 = arith.constant 0 : index
      %c0_14 = arith.constant 0 : index
      %72 = vector.load %arg5[%c0_13, %c0_14] : memref<8x128xf32, #tpu.memory_space<vmem>>, vector<8x128xf32>
      %cst_15 = arith.constant 9.99999997E-7 : f32
      %73 = vector.broadcast %cst_15 : f32 to vector<8x1xf32>
      %74 = arith.addf %71, %73 : vector<8x1xf32>
      %75 = vector.broadcast %74 : vector<8x1xf32> to vector<8x128xf32>
      %76 = arith.divf %72, %75 : vector<8x128xf32>
      %c0_16 = arith.constant 0 : index
      %c0_17 = arith.constant 0 : index
      %77 = vector.load %arg4[%c0_16, %c0_17] : memref<8x128xf32, #tpu.memory_space<vmem>>, vector<8x128xf32>
      tpu.vector_store %arg4[%c0_16, %c0_17], %76 {strides = array<i32>} : memref<8x128xf32, #tpu.memory_space<vmem>>, vector<8x128xf32>,
    } else {
    }
    return
  }
  func.func @transform_0(%arg0: i32, %arg1: i32) -> (i32, i32) {
    %c0_i32 = arith.constant 0 : i32
    %c0_i32_0 = arith.constant 0 : i32
    return %arg0, %c0_i32 : i32, i32
  }
  func.func @transform_1(%arg0: i32, %arg1: i32) -> (i32, i32) {
    %c0_i32 = arith.constant 0 : i32
    %c0_i32_0 = arith.constant 0 : i32
    return %arg1, %c0_i32 : i32, i32
  }
  func.func @transform_2(%arg0: i32, %arg1: i32) -> (i32, i32) {
    %c0_i32 = arith.constant 0 : i32
    %c0_i32_0 = arith.constant 0 : i32
    return %arg0, %c0_i32 : i32, i32
  }
}

</mosaic_0001>

<llo_original>
// kernel: tpu_custom_call.1
$region0: #{tpu_custom_call.1}
  #allocation0 [shape = 'u32[]', space=smem, size = 0x4, offset = 0x4, fixed_abs, tag = 'smem constant byte address 0x4 - core index']
  #allocation1 [shape = 'u32[72,128]{1,0:T(1,128)}', space=vmem, size = 0x9000, scoped, tag = 'internal scratch']
  #allocation2 [shape = 'f32[8,128]{1,0:T(8,128)}', space=vmem, size = 0x1000, scoped, tag = 'scratch operand']
  %s0 = inlined_call_operand.vmem [shape: s32[16,8], index: 0, kind: input, shape index: {}]
  %s1 = inlined_call_operand.hbm [shape: f32[128,128], index: 1, kind: input, shape index: {}]
  %s2 = inlined_call_operand.hbm [shape: f32[16,128], index: 2, kind: output, shape index: {}]
  %s3 = sld [smem:[#allocation0]]
  $region53: #{tpu_custom_call.1} parent=0
    _
  %s5 = ssub.s32 1, %s3
  %s6 = scalar_select 0, %s5, %s3
  $region1: #{tpu_custom_call.1} parent=0
    #allocation3 [shape = 'u8[65536]{0}', space=vmem, size = 0x10000, scoped, tag = 'input window, operand 1, single buffered']
    #allocation4 [shape = 's32[2]{0}', space=sflag, size = 0x8, scoped, tag = 'scoped memory for tpu_custom_call.1']
    #allocation5 [shape = 's32[2]{0}', space=sflag, size = 0x8, scoped, tag = 'scoped memory for tpu_custom_call.1']
    #allocation6 [shape = 'u8[8192]{0}', space=vmem, size = 0x2000, scoped, tag = 'output window, operand 0']
    %7 = vsyncpa [#allocation4], 0
    %8 = vsyncpa [#allocation5], 0
    %s9 = scalar_lea.sflag [#allocation5], 1
    %10 = vsyncpa %s9, 0
    loop: start=0, step=1, limit=4
    $region2: #{tpu_custom_call.1} parent=1 // loop_pre_header
      _
    $region3: #{tpu_custom_call.1} parent=1 // loop_header
      %s12 = sphi 0, %s16
      %p13 = scmp.ge.s32.totalorder %s12, 4
      %s19 = sphi 0, %s31
      %s20 = sphi 0, %s27
      %s21 = sphi 0, %s19
      %s22 = sphi 0, %s20
      %s23 = sphi 0, %s21
      %s24 = sphi 0, %s22
      %s34 = sphi 0, %s36
      %s37 = sphi 0, %s34
      %s38 = sphi 0, %s37
      %s54 = sphi 0, %s38
      %s60 = sphi 0, %s62
      %s63 = sphi 0, %s60
      %s64 = sphi 0, %s63
      %s80 = sphi 0, %s64
      %s86 = sphi 0, %s88
      %s89 = sphi 0, %s86
      %s90 = sphi 0, %s89
      %s106 = sphi 0, %s90
    $region4: #{tpu_custom_call.1} parent=1 // loop_header_branch
      %15 = sbr.rel (%p13) target = $region8
    $region5: #{tpu_custom_call.1} parent=1 // loop_body
      %s17 = ssub.s32 %s12, 1
      %s18 = ssub.s32 %s12, 2
      %s25 = sadd.s32 1, %s20
      %p26 = scmp.ge.s32.totalorder %s25, 1
      %s27 = scalar_select %p26, 0, %s25
      %s28 = sadd.s32 1, %s19
      %s29 = scalar_select %p26, %s28, %s19
      %p30 = scmp.ge.s32.totalorder %s29, 2
      %s31 = scalar_select %p30, 0, %s29
      %s32 = ssub.s32 %s19, %s31
      %p33 = scmp.eq.s32.totalorder %s32, 0
      %s35 = sadd.s32 %s34, 1
      %s36 = scalar_select %p33, %s34, %s35
      %p39 = pneg %p33
      %p40 = scmp.eq.s32.totalorder %s12, 1
      %p41 = por %p39, %p40
      %p42 = scmp.ne.s32.totalorder %s34, %s37
      %p43 = scmp.eq.s32.totalorder %s12, 0
      %p44 = por %p42, %p43
      %p45 = scmp.ne.s32.totalorder %s34, %s37
      %p46 = scmp.eq.s32.totalorder %s17, 1
      %p47 = por %p45, %p46
      %p48 = scmp.ne.s32.totalorder %s37, %s38
      %p49 = scmp.eq.s32.totalorder %s17, 0
      %p50 = por %p48, %p49
      %p51 = scmp.ne.s32.totalorder %s37, %s38
      %p52 = scmp.eq.s32.totalorder %s18, 1
      %p53 = por %p51, %p52
      %p55 = scmp.ne.s32.totalorder %s38, %s54
      %p56 = scmp.eq.s32.totalorder %s18, 0
      %p57 = por %p55, %p56
      %s58 = ssub.s32 %s20, %s27
      %p59 = scmp.eq.s32.totalorder %s58, 0
      %s61 = sadd.s32 %s60, 1
      %s62 = scalar_select %p59, %s60, %s61
      %p65 = pneg %p59
      %p66 = scmp.eq.s32.totalorder %s12, 1
      %p67 = por %p65, %p66
      %p68 = scmp.ne.s32.totalorder %s60, %s63
      %p69 = scmp.eq.s32.totalorder %s12, 0
      %p70 = por %p68, %p69
      %p71 = scmp.ne.s32.totalorder %s60, %s63
      %p72 = scmp.eq.s32.totalorder %s17, 1
      %p73 = por %p71, %p72
      %p74 = scmp.ne.s32.totalorder %s63, %s64
      %p75 = scmp.eq.s32.totalorder %s17, 0
      %p76 = por %p74, %p75
      %p77 = scmp.ne.s32.totalorder %s63, %s64
      %p78 = scmp.eq.s32.totalorder %s18, 1
      %p79 = por %p77, %p78
      %p81 = scmp.ne.s32.totalorder %s64, %s80
      %p82 = scmp.eq.s32.totalorder %s18, 0
      %p83 = por %p81, %p82
      %s84 = ssub.s32 %s19, %s31
      %p85 = scmp.eq.s32.totalorder %s84, 0
      %s87 = sadd.s32 %s86, 1
      %s88 = scalar_select %p85, %s86, %s87
      %p91 = pneg %p85
      %p92 = scmp.eq.s32.totalorder %s12, 1
      %p93 = por %p91, %p92
      %p94 = scmp.ne.s32.totalorder %s86, %s89
      %p95 = scmp.eq.s32.totalorder %s12, 0
      %p96 = por %p94, %p95
      %p97 = scmp.ne.s32.totalorder %s86, %s89
      %p98 = scmp.eq.s32.totalorder %s17, 1
      %p99 = por %p97, %p98
      %p100 = scmp.ne.s32.totalorder %s89, %s90
      %p101 = scmp.eq.s32.totalorder %s17, 0
      %p102 = por %p100, %p101
      %p103 = scmp.ne.s32.totalorder %s89, %s90
      %p104 = scmp.eq.s32.totalorder %s18, 1
      %p105 = por %p103, %p104
      %p107 = scmp.ne.s32.totalorder %s90, %s106
      %p108 = scmp.eq.s32.totalorder %s18, 0
      %p109 = por %p107, %p108
      %p110 = scmp.le.s32.totalorder 1, %s12
      %p111 = scmp.lt.s32.totalorder %s12, 3
      %p112 = pnand %p110, %p111
      %p113 = pneg %p112
      // Predicated region
      $region9: #{tpu_custom_call.1} parent=5 // pred_check
        _
      $region10: #{tpu_custom_call.1} parent=5 // pred_check_branch
        %115 = sbr.rel (%p112) target = $region12
      $region11: #{tpu_custom_call.1} parent=5 // pred_region
        %s116 = ssub.s32 %s12, 1
        // Predicated region
        $region13: #{tpu_custom_call.1} parent=11 // pred_check
          %p117 = pneg %p76
        $region14: #{tpu_custom_call.1} parent=11 // pred_check_branch
          %119 = sbr.rel (%p117) target = $region16
        $region15: #{tpu_custom_call.1} parent=11 // pred_region
          %s120 = smul.u32 16, %s22
          %122 = vsyncadd [#allocation4], 0
          %s123 = smul.addr %s120, 8
          %s124 = scalar_lea.hbm %s1, %s123
          %s125 = sshll.u32 %s124, 4
          %s126 = int_to_ptr.hbm [resolvable:$true] %s125
          %s127 = sshll.u32 [#allocation3], 4
          %s128 = int_to_ptr.vmem [resolvable:$true] %s127
          %133 = dma.hbm_to_vmem [thread:$0]  %s126, 2048, %s128, [#allocation4], 128, 128, 8
        $region16: #{tpu_custom_call.1} parent=11 // pred_fallthru
          _
      $region12: #{tpu_custom_call.1} parent=5 // pred_fallthru
        _
      %p134 = scmp.lt.s32.totalorder %s12, 2
      // Predicated region
      $region17: #{tpu_custom_call.1} parent=5 // pred_check
        %p135 = pneg %p134
      $region18: #{tpu_custom_call.1} parent=5 // pred_check_branch
        %137 = sbr.rel (%p135) target = $region20
      $region19: #{tpu_custom_call.1} parent=5 // pred_region
        // Predicated region
        $region21: #{tpu_custom_call.1} parent=19 // pred_check
          %p138 = pneg %p44
        $region22: #{tpu_custom_call.1} parent=19 // pred_check_branch
          %140 = sbr.rel (%p138) target = $region24
        $region23: #{tpu_custom_call.1} parent=19 // pred_region
          %p141 = scmp.lt.s32.totalorder %s19, 1
          %s142 = scalar_select %p141, %s19, 1
          %s143 = smul.addr %s142, 8
          %s144 = scalar_lea.vmem %s0, %s143
        $region24: #{tpu_custom_call.1} parent=19 // pred_fallthru
          _
      $region20: #{tpu_custom_call.1} parent=5 // pred_fallthru
        _
      %p145 = scmp.le.s32.totalorder 1, %s12
      %p146 = scmp.lt.s32.totalorder %s12, 3
      %p147 = pnand %p145, %p146
      %p148 = pneg %p147
      // Predicated region
      $region25: #{tpu_custom_call.1} parent=5 // pred_check
        _
      $region26: #{tpu_custom_call.1} parent=5 // pred_check_branch
        %150 = sbr.rel (%p147) target = $region28
      $region27: #{tpu_custom_call.1} parent=5 // pred_region
        %s151 = ssub.s32 %s12, 1
        // Predicated region
        $region29: #{tpu_custom_call.1} parent=27 // pred_check
          %p152 = pneg %p76
        $region30: #{tpu_custom_call.1} parent=27 // pred_check_branch
          %154 = sbr.rel (%p152) target = $region32
        $region31: #{tpu_custom_call.1} parent=27 // pred_region
          %156 = dma.done [#allocation4], 2048
        $region32: #{tpu_custom_call.1} parent=27 // pred_fallthru
          _
        %p157 = scmp.lt.s32.totalorder %s21, 1
        %s158 = scalar_select %p157, %s21, 1
        %s159 = smul.addr %s158, 8
        %s160 = scalar_lea.vmem %s0, %s159
        %p161 = pneg %p50
        %p162 = pneg %p47
        %p163 = pneg %p76
        %p164 = pneg %p73
        %p165 = pneg %p102
        %p166 = pneg %p99
        %s167 = sand.u32 %s89, 1
        %s168 = scalar_lea.sflag [#allocation5], %s167
        %s169 = sand.u32 %s89, 1
        %s170 = smul.addr %s169, 8
        %s171 = scalar_lea.vmem [#allocation6], %s170
        %p172 = scmp.lt.s32.totalorder %s21, 1
        %s173 = scalar_select %p172, %s21, 1
        %s174 = smul.addr %s173, 8
        %s175 = scalar_lea.vmem %s0, %s174
        %s176 = smul.u32 16, %s22
        %p177 = scmp.eq.s32.totalorder %s22, 0
        // Predicated region
        $region33: #{tpu_custom_call.1} parent=27 // pred_check
          %p178 = pneg %p177
        $region34: #{tpu_custom_call.1} parent=27 // pred_check_branch
          %180 = sbr.rel (%p178) target = $region36
        $region35: #{tpu_custom_call.1} parent=27 // pred_region
          %181 = vst [vmem:[#allocation2] sm:$0xff] 0.0
        $region36: #{tpu_custom_call.1} parent=27 // pred_fallthru
          _
        %v182 = vld [vmem:[%s175] sm:$0xff]
        %s183 = smul.u32 %s22, 128
        %v184 = vlaneseq
        %v185 = vand.u32 %v184, 127
        %v186 = vstv %s183
        %v187 = vadd.s32 %v185, %v186
        %188 = vset.pattern.permute.xlu0 0
        %189 = vperm.xlu0 %188, %v182
        %v190 = vpop.permute.xlu0 %189
        %vm191 = vcmp.eq.s32.totalorder %v190, %v187
        %v192 = vsel %vm191, 1, 0
        %193 = vset.pattern.permute.xlu0 1
        %194 = vperm.xlu0 %193, %v182
        %v195 = vpop.permute.xlu0 %194
        %vm196 = vcmp.eq.s32.totalorder %v195, %v187
        %v197 = vsel %vm196, 1, 0
        %v198 = vadd.s32 %v192, %v197
        %199 = vset.pattern.permute.xlu0 2
        %200 = vperm.xlu0 %199, %v182
        %v201 = vpop.permute.xlu0 %200
        %vm202 = vcmp.eq.s32.totalorder %v201, %v187
        %v203 = vsel %vm202, 1, 0
        %v204 = vadd.s32 %v198, %v203
        %205 = vset.pattern.permute.xlu0 3
        %206 = vperm.xlu0 %205, %v182
        %v207 = vpop.permute.xlu0 %206
        %vm208 = vcmp.eq.s32.totalorder %v207, %v187
        %v209 = vsel %vm208, 1, 0
        %v210 = vadd.s32 %v204, %v209
        %211 = vset.pattern.permute.xlu0 4
        %212 = vperm.xlu0 %211, %v182
        %v213 = vpop.permute.xlu0 %212
        %vm214 = vcmp.eq.s32.totalorder %v213, %v187
        %v215 = vsel %vm214, 1, 0
        %v216 = vadd.s32 %v210, %v215
        %217 = vset.pattern.permute.xlu0 5
        %218 = vperm.xlu0 %217, %v182
        %v219 = vpop.permute.xlu0 %218
        %vm220 = vcmp.eq.s32.totalorder %v219, %v187
        %v221 = vsel %vm220, 1, 0
        %v222 = vadd.s32 %v216, %v221
        %223 = vset.pattern.permute.xlu0 6
        %224 = vperm.xlu0 %223, %v182
        %v225 = vpop.permute.xlu0 %224
        %vm226 = vcmp.eq.s32.totalorder %v225, %v187
        %v227 = vsel %vm226, 1, 0
        %v228 = vadd.s32 %v222, %v227
        %229 = vset.pattern.permute.xlu0 7
        %230 = vperm.xlu0 %229, %v182
        %v231 = vpop.permute.xlu0 %230
        %vm232 = vcmp.eq.s32.totalorder %v231, %v187
        %v233 = vsel %vm232, 1, 0
        %v234 = vadd.s32 %v228, %v233
        %v235 = vld [vmem:[#allocation2] sm:$0xff]
        %v236 = vcvt.s32.f32 %v234
        %v237 = vld [vmem:[#allocation3] sm:$0xff]
        %v238 = vld [vmem:[#allocation3 + $0x8] sm:$0xff]
        %v239 = vld [vmem:[#allocation3 + $0x10] sm:$0xff]
        %v240 = vld [vmem:[#allocation3 + $0x18] sm:$0xff]
        %v241 = vld [vmem:[#allocation3 + $0x20] sm:$0xff]
        %v242 = vld [vmem:[#allocation3 + $0x28] sm:$0xff]
        %v243 = vld [vmem:[#allocation3 + $0x30] sm:$0xff]
        %v244 = vld [vmem:[#allocation3 + $0x38] sm:$0xff]
        %v245 = vld [vmem:[#allocation3 + $0x40] sm:$0xff]
        %v246 = vld [vmem:[#allocation3 + $0x48] sm:$0xff]
        %v247 = vld [vmem:[#allocation3 + $0x50] sm:$0xff]
        %v248 = vld [vmem:[#allocation3 + $0x58] sm:$0xff]
        %v249 = vld [vmem:[#allocation3 + $0x60] sm:$0xff]
        %v250 = vld [vmem:[#allocation3 + $0x68] sm:$0xff]
        %v251 = vld [vmem:[#allocation3 + $0x70] sm:$0xff]
        %v252 = vld [vmem:[#allocation3 + $0x78] sm:$0xff]
        %253 = vmatpush.msra.mxu0 %v252
        %254 = vmatpush.msra.mxu0 %v251
        %255 = vmatpush.msra.mxu0 %v250
        %256 = vmatpush.msra.mxu0 %v249
        %257 = vmatpush.msra.mxu0 %v248
        %258 = vmatpush.msra.mxu0 %v247
        %259 = vmatpush.msra.mxu0 %v246
        %260 = vmatpush.msra.mxu0 %v245
        %261 = vmatpush.msra.mxu0 %v244
        %262 = vmatpush.msra.mxu0 %v243
        %263 = vmatpush.msra.mxu0 %v242
        %264 = vmatpush.msra.mxu0 %v241
        %265 = vmatpush.msra.mxu0 %v240
        %266 = vmatpush.msra.mxu0 %v239
        %267 = vmatpush.msra.mxu0 %v238
        %268 = vmatpush.msra.mxu0 %v237
        %269 = vmatmul.f32.gmra.mxu0 %v236
        %v270 = vpop.f32.mrf.mxu0
        %v271 = vadd.f32 0.0, %v270
        %272 = vdwg.mxu0
        %v273 = vadd.f32 %v235, %v271
        %274 = vst [vmem:[#allocation2] sm:$0xff] %v273
        // Predicated region
        $region37: #{tpu_custom_call.1} parent=27 // pred_check
          %p275 = pneg %p177
        $region38: #{tpu_custom_call.1} parent=27 // pred_check_branch
          %277 = sbr.rel (%p275) target = $region40
        $region39: #{tpu_custom_call.1} parent=27 // pred_region
          %vm278 = vcmp.gt.s32.totalorder %v182, 0
          %v279 = vsel %vm278, 1, 0
          %v280 = vcvt.s32.f32 %v279
          %vm281 = vcmask 64512
          %v282 = vsel %vm281, %v280, 0.0
          %283 = vadd.xlane.f32.xlu0 %v282
          %v284 = vpop.xlane.xlu0 %283
          %v285 = vld [vmem:[#allocation2] sm:$0xff]
          %v286 = vadd.f32 %v284, 1e-06
          %v287 = vrcp.pop %v286
          %v288 = vmul.f32 %v286, %v287
          %v289 = vsub.f32 1.0, %v288
          %v290 = vmul.f32 %v287, %v289
          %v291 = vadd.f32 %v287, %v290
          %vm292 = vweird.f32 %v286
          %vm293 = vweird.f32 %v287
          %vm294 = vmor %vm292, %vm293
          %v295 = vsel %vm294, %v287, %v291
          %v296 = vand.u32 2147483647, %v286
          %vm297 = vcmp.eq.f32.partialorder %v296, 8.507059e+37
          %v298 = vand.u32 %v286, 2147483648
          %v299 = vor.u32 1.1754944e-38, %v298
          %v300 = vsel %vm297, %v299, %v295
          %v301 = vmul.f32 %v285, %v300
          %302 = vst [vmem:[%s171] sm:$0xff] %v301
        $region40: #{tpu_custom_call.1} parent=27 // pred_fallthru
          _
        %s303 = sand.u32 %s89, 1
        %s304 = scalar_lea.sflag [#allocation5], %s303
        %s305 = sand.u32 %s89, 1
        %s306 = smul.addr %s305, 8
        %s307 = scalar_lea.vmem [#allocation6], %s306
        // Predicated region
        $region41: #{tpu_custom_call.1} parent=27 // pred_check
          %p308 = pneg %p99
        $region42: #{tpu_custom_call.1} parent=27 // pred_check_branch
          %310 = sbr.rel (%p308) target = $region44
        $region43: #{tpu_custom_call.1} parent=27 // pred_region
          %312 = vsyncadd %s304, 0
          %s313 = smul.addr %s21, 8
          %s314 = scalar_lea.hbm %s2, %s313
          %s316 = sshll.u32 %s307, 4
          %s317 = int_to_ptr.vmem [resolvable:$true] %s316
          %s318 = sshll.u32 %s314, 4
          %s319 = int_to_ptr.hbm [resolvable:$true] %s318
          %321 = dma.vmem_to_hbm [thread:$0]  %s317, 128, %s319, %s304
        $region44: #{tpu_custom_call.1} parent=27 // pred_fallthru
          _
      $region28: #{tpu_custom_call.1} parent=5 // pred_fallthru
        _
      %p322 = scmp.le.s32.totalorder 2, %s12
      // Predicated region
      $region45: #{tpu_custom_call.1} parent=5 // pred_check
        %p323 = pneg %p322
      $region46: #{tpu_custom_call.1} parent=5 // pred_check_branch
        %325 = sbr.rel (%p323) target = $region48
      $region47: #{tpu_custom_call.1} parent=5 // pred_region
        %s326 = ssub.s32 %s12, 2
        // Predicated region
        $region49: #{tpu_custom_call.1} parent=47 // pred_check
          %p327 = pneg %p105
        $region50: #{tpu_custom_call.1} parent=47 // pred_check_branch
          %329 = sbr.rel (%p327) target = $region52
        $region51: #{tpu_custom_call.1} parent=47 // pred_region
          %s330 = sand.u32 %s90, 1
          %s331 = scalar_lea.sflag [#allocation5], %s330
          %s332 = sand.u32 %s90, 1
          %s333 = smul.addr %s332, 8
          %s334 = scalar_lea.vmem [#allocation6], %s333
          %336 = dma.done %s331, 128
        $region52: #{tpu_custom_call.1} parent=47 // pred_fallthru
          _
      $region48: #{tpu_custom_call.1} parent=5 // pred_fallthru
        _
    $region6: #{tpu_custom_call.1} parent=1 // loop_footer
      %s16 = sadd.s32 1, %s12
    $region7: #{tpu_custom_call.1} parent=1 // loop_footer_branch
      %11 = sbr.rel target = $region3
    $region8: #{tpu_custom_call.1} parent=1 // loop_exit
      _
    %337 = vsyncpa [#allocation4], 1
    %s338 = scalar_lea.sflag [#allocation4], 1
    %339 = vsyncpa %s338, 1
    %340 = vsyncpa [#allocation5], 1
    %s341 = scalar_lea.sflag [#allocation5], 1
    %342 = vsyncpa %s341, 1

</llo_original>
